<compile_context>
chip_gen: v6e
topology: v6e:2x2x1
jax: 0.10.0
libtpu: 0.0.40
codegen_flags: <defaults>
</compile_context>

<pallas_src>
import jax
import jax.numpy as jnp
from jax.experimental import pallas as pl
from jax.experimental.pallas import tpu as pltpu

NEG_INF = -1e30  # finite f32 pad bias: exp(pad - max) underflows to exactly 0


def _round_up(n, m):
    return ((n + m - 1) // m) * m


def mlp_kernel(x_ref, w1_ref, b1_ref, w2_ref, b2_ref, o_ref):
    # x arrives as f32 straight from the caller; cast to bf16 in-kernel (VPU is
    # idle here, and this avoids a separate XLA pad/cast launch in the wrapper).
    x = x_ref[...].astype(jnp.bfloat16)   # [TB, in]
    w1 = w1_ref[...]                      # [in, HID_PAD]       bf16 (0 in pad cols)
    b1 = b1_ref[...]                      # [1,  HID_PAD]       f32  (0 in pad cols)
    w2 = w2_ref[...]                      # [HID_PAD, OUT_PAD]  bf16 (0 in pad rows/cols)
    b2 = b2_ref[...]                      # [1,  OUT_PAD]       f32  (-1e30 in pad cols)

    # Linear 1 + ReLU (bf16 MXU matmul, f32 accumulate). Padded hidden columns
    # are relu(0 + 0) == 0 and hit zero rows of w2 -> no effect on the result.
    h = jnp.dot(x, w1, preferred_element_type=jnp.float32) + b1
    h = jnp.maximum(h, 0.0)

    # Linear 2 (lane-dense 128-wide padded output; padded logits ~= -1e30).
    logits = jnp.dot(h.astype(jnp.bfloat16), w2,
                     preferred_element_type=jnp.float32) + b2

    # Numerically stable softmax in f32. Exact divide (approx reciprocal was
    # not accurate enough for the sum-to-1 property).
    m = jnp.max(logits, axis=-1, keepdims=True)
    e = jnp.exp(logits - m)
    denom = jnp.sum(e, axis=-1, keepdims=True)
    o_ref[...] = (e / denom).astype(o_ref.dtype)   # bf16 store: halves HBM write


def prepare_params(w1, b1, w2, b2):
    """One-time (out-of-hot-path) weight prep: bf16 casts + lane padding."""
    in_dim, hid = w1.shape
    out_dim = w2.shape[1]
    hid_pad = _round_up(hid, 128)
    out_pad = _round_up(out_dim, 128)

    w1p = jnp.zeros((in_dim, hid_pad), jnp.bfloat16).at[:, :hid].set(
        w1.astype(jnp.bfloat16))
    b1p = jnp.zeros((1, hid_pad), jnp.float32).at[:, :hid].set(
        b1.astype(jnp.float32).reshape(1, hid))
    w2p = jnp.zeros((hid_pad, out_pad), jnp.bfloat16).at[:hid, :out_dim].set(
        w2.astype(jnp.bfloat16))
    b2p = jnp.full((1, out_pad), NEG_INF, jnp.float32).at[:, :out_dim].set(
        b2.astype(jnp.float32).reshape(1, out_dim))
    return (w1p, b1p, w2p, b2p), out_dim


def mlp_forward(x, prepared_params, out_dim, *, tb=512):
    w1p, b1p, w2p, b2p = prepared_params
    B, in_dim = x.shape
    hid_pad = w1p.shape[1]
    out_pad = w2p.shape[1]

    # Batch tiling: multiples of 16 (bf16 packs 2 rows per sublane). Keep the
    # grid length >= 2 whenever possible so ("parallel",) can shard the batch
    # axis across the 2 TensorCores on v7x; otherwise one big tile. VMEM
    # footprint (weights ~70 KB + 2x(tb*16*4 + tb*128*2) bytes) is far below
    # the scoped limit on v5e/v6e/v7x for tb up to several thousand.
    b16 = _round_up(B, 16)
    if b16 >= 32:
        n_tiles = max(2, pl.cdiv(b16, tb))
    else:
        n_tiles = 1
    tb_eff = _round_up(pl.cdiv(b16, n_tiles), 16)
    bp = n_tiles * tb_eff

    # Only pad the batch when actually needed; no dtype conversion here.
    xp = x if bp == B else jnp.zeros((bp, in_dim), x.dtype).at[:B].set(x)

    out = pl.pallas_call(
        mlp_kernel,
        out_shape=jax.ShapeDtypeStruct((bp, out_pad), jnp.bfloat16),
        grid=(n_tiles,),
        in_specs=[
            pl.BlockSpec((tb_eff, in_dim), lambda i: (i, 0)),    # x: streamed over batch
            pl.BlockSpec((in_dim, hid_pad), lambda i: (0, 0)),   # w1: VMEM-resident
            pl.BlockSpec((1, hid_pad), lambda i: (0, 0)),        # b1
            pl.BlockSpec((hid_pad, out_pad), lambda i: (0, 0)),  # w2 (padded)
            pl.BlockSpec((1, out_pad), lambda i: (0, 0)),        # b2 (padded, -1e30)
        ],
        out_specs=pl.BlockSpec((tb_eff, out_pad), lambda i: (i, 0)),
        compiler_params=pltpu.CompilerParams(
            dimension_semantics=("parallel",),
        ),
    )(xp, w1p, b1p, w2p, b2p)

    return out[:B, :out_dim]


def init_params(key, input_size, hidden_size, output_size):
    k1, k2, k3, k4 = jax.random.split(key, 4)
    # Deterministic synthetic init (PyTorch-Linear-like scale: U(-1/sqrt(in), 1/sqrt(in)))
    s1 = 1.0 / jnp.sqrt(input_size)
    s2 = 1.0 / jnp.sqrt(hidden_size)
    w1 = jax.random.uniform(k1, (input_size, hidden_size), jnp.float32, -s1, s1)
    b1 = jax.random.uniform(k2, (1, hidden_size), jnp.float32, -s1, s1)
    w2 = jax.random.uniform(k3, (hidden_size, output_size), jnp.float32, -s2, s2)
    b2 = jax.random.uniform(k4, (1, output_size), jnp.float32, -s2, s2)
    return w1, b1, w2, b2


if __name__ == "__main__":
    INPUT_SIZE = 16
    HIDDEN_SIZE = 32     # layers_size = (32,)
    OUTPUT_SIZE = 8
    BATCH = 256          # -> two 128-row tiles (even grid: v7x megacore split)

    key = jax.random.PRNGKey(0)
    kx, kp = jax.random.split(key)
    x = jax.random.normal(kx, (BATCH, INPUT_SIZE), jnp.float32)
    w1, b1, w2, b2 = init_params(kp, INPUT_SIZE, HIDDEN_SIZE, OUTPUT_SIZE)

    params, out_dim = prepare_params(w1, b1, w2, b2)   # one-time weight prep
    out = mlp_forward(x, params, out_dim, tb=512)
    jax.block_until_ready(out)

    # Pure-JAX f32 reference of the same forward pass.
    h_ref = jnp.maximum(x @ w1 + b1, 0.0)
    ref = jax.nn.softmax(h_ref @ w2 + b2, axis=-1)

    out_f32 = out.astype(jnp.float32)
    assert out.shape == (BATCH, OUTPUT_SIZE)
    assert out.dtype == jnp.bfloat16
    # bf16 activations/weights/output -> bf16-level tolerances.
    assert jnp.allclose(out_f32, ref, atol=2e-2, rtol=2e-2)
    assert jnp.allclose(jnp.sum(out_f32, axis=-1), 1.0, atol=2e-2)

    print("KERNEL_OK")
</pallas_src>

<mosaic_0001>
module attributes {stable_mosaic.version = 11 : i64} {
  func.func @mlp_kernel(%arg0: i32, %arg1: memref<128x16xf32, #tpu.memory_space<vmem>>, %arg2: memref<16x128xbf16, #tpu.memory_space<vmem>>, %arg3: memref<1x128xf32, #tpu.memory_space<vmem>>, %arg4: memref<128x128xbf16, #tpu.memory_space<vmem>>, %arg5: memref<1x128xf32, #tpu.memory_space<vmem>>, %arg6: memref<128x128xbf16, #tpu.memory_space<vmem>>) attributes {dimension_semantics = [#tpu.dimension_semantics<parallel>], iteration_bounds = array<i64: 2>, scalar_prefetch = 0 : i64, scratch_operands = 0 : i64, tpu.core_type = #tpu.core_type<tc>, window_params = [{transform_indices = @transform_0, window_bounds = array<i64: 128, 16>}, {pipeline_mode = #tpu.pipeline_mode<synchronous>, transform_indices = @transform_1, window_bounds = array<i64: 16, 128>}, {pipeline_mode = #tpu.pipeline_mode<synchronous>, transform_indices = @transform_2, window_bounds = array<i64: 1, 128>}, {pipeline_mode = #tpu.pipeline_mode<synchronous>, transform_indices = @transform_3, window_bounds = array<i64: 128, 128>}, {pipeline_mode = #tpu.pipeline_mode<synchronous>, transform_indices = @transform_4, window_bounds = array<i64: 1, 128>}, {transform_indices = @transform_5, window_bounds = array<i64: 128, 128>}]} {
    %c0 = arith.constant 0 : index
    %c0_0 = arith.constant 0 : index
    %0 = vector.load %arg1[%c0, %c0_0] : memref<128x16xf32, #tpu.memory_space<vmem>>, vector<128x16xf32>
    %1 = arith.truncf %0 : vector<128x16xf32> to vector<128x16xbf16>
    %c0_1 = arith.constant 0 : index
    %c0_2 = arith.constant 0 : index
    %2 = vector.load %arg2[%c0_1, %c0_2] : memref<16x128xbf16, #tpu.memory_space<vmem>>, vector<16x128xbf16>
    %c0_3 = arith.constant 0 : index
    %c0_4 = arith.constant 0 : index
    %3 = vector.load %arg3[%c0_3, %c0_4] : memref<1x128xf32, #tpu.memory_space<vmem>>, vector<1x128xf32>
    %c0_5 = arith.constant 0 : index
    %c0_6 = arith.constant 0 : index
    %4 = vector.load %arg4[%c0_5, %c0_6] : memref<128x128xbf16, #tpu.memory_space<vmem>>, vector<128x128xbf16>
    %c0_7 = arith.constant 0 : index
    %c0_8 = arith.constant 0 : index
    %5 = vector.load %arg5[%c0_7, %c0_8] : memref<1x128xf32, #tpu.memory_space<vmem>>, vector<1x128xf32>
    %cst = arith.constant dense<0.000000e+00> : vector<128x128xf32>
    %6 = tpu.matmul %1, %2, %cst {dimension_numbers = #tpu.dot_dimension_numbers<[1], [0], [0], [1], [0, 0, 1, 1], [], []>} : vector<128x16xbf16>, vector<16x128xbf16>, vector<128x128xf32> -> vector<128x128xf32>
    %7 = vector.broadcast %3 : vector<1x128xf32> to vector<128x128xf32>
    %8 = arith.addf %6, %7 : vector<128x128xf32>
    %cst_9 = arith.constant 0.000000e+00 : f32
    %9 = vector.broadcast %cst_9 : f32 to vector<128x128xf32>
    %10 = arith.maximumf %8, %9 : vector<128x128xf32>
    %11 = arith.truncf %10 : vector<128x128xf32> to vector<128x128xbf16>
    %cst_10 = arith.constant dense<0.000000e+00> : vector<128x128xf32>
    %12 = tpu.matmul %11, %4, %cst_10 {dimension_numbers = #tpu.dot_dimension_numbers<[1], [0], [0], [1], [0, 0, 1, 1], [], []>} : vector<128x128xbf16>, vector<128x128xbf16>, vector<128x128xf32> -> vector<128x128xf32>
    %13 = vector.broadcast %5 : vector<1x128xf32> to vector<128x128xf32>
    %14 = arith.addf %12, %13 : vector<128x128xf32>
    %cst_11 = arith.constant dense<0xFF800000> : vector<128xf32>
    %15 = vector.multi_reduction <maximumf>, %14, %cst_11 [1] : vector<128x128xf32> to vector<128xf32>
    %16 = vector.shape_cast %15 : vector<128xf32> to vector<128x1xf32>
    %17 = vector.broadcast %16 : vector<128x1xf32> to vector<128x128xf32>
    %18 = arith.subf %14, %17 : vector<128x128xf32>
    %19 = math.exp %18 : vector<128x128xf32>
    %cst_12 = arith.constant dense<0.000000e+00> : vector<128xf32>
    %20 = vector.multi_reduction <add>, %19, %cst_12 [1] : vector<128x128xf32> to vector<128xf32>
    %21 = vector.shape_cast %20 : vector<128xf32> to vector<128x1xf32>
    %22 = vector.broadcast %21 : vector<128x1xf32> to vector<128x128xf32>
    %23 = arith.divf %19, %22 : vector<128x128xf32>
    %24 = arith.truncf %23 : vector<128x128xf32> to vector<128x128xbf16>
    %c0_13 = arith.constant 0 : index
    %c0_14 = arith.constant 0 : index
    %25 = vector.load %arg6[%c0_13, %c0_14] : memref<128x128xbf16, #tpu.memory_space<vmem>>, vector<128x128xbf16>
    tpu.vector_store %arg6[%c0_13, %c0_14], %24 {strides = array<i32>} : memref<128x128xbf16, #tpu.memory_space<vmem>>, vector<128x128xbf16>,
    return
  }
  func.func @transform_0(%arg0: i32) -> (i32, i32) {
    %c0_i32 = arith.constant 0 : i32
    %c0_i32_0 = arith.constant 0 : i32
    return %arg0, %c0_i32 : i32, i32
  }
  func.func @transform_1(%arg0: i32) -> (i32, i32) {
    %c0_i32 = arith.constant 0 : i32
    %c0_i32_0 = arith.constant 0 : i32
    %c0_i32_1 = arith.constant 0 : i32
    return %c0_i32, %c0_i32_0 : i32, i32
  }
  func.func @transform_2(%arg0: i32) -> (i32, i32) {
    %c0_i32 = arith.constant 0 : i32
    %c0_i32_0 = arith.constant 0 : i32
    %c0_i32_1 = arith.constant 0 : i32
    return %c0_i32, %c0_i32_0 : i32, i32
  }
  func.func @transform_3(%arg0: i32) -> (i32, i32) {
    %c0_i32 = arith.constant 0 : i32
    %c0_i32_0 = arith.constant 0 : i32
    %c0_i32_1 = arith.constant 0 : i32
    return %c0_i32, %c0_i32_0 : i32, i32
  }
  func.func @transform_4(%arg0: i32) -> (i32, i32) {
    %c0_i32 = arith.constant 0 : i32
    %c0_i32_0 = arith.constant 0 : i32
    %c0_i32_1 = arith.constant 0 : i32
    return %c0_i32, %c0_i32_0 : i32, i32
  }
  func.func @transform_5(%arg0: i32) -> (i32, i32) {
    %c0_i32 = arith.constant 0 : i32
    %c0_i32_0 = arith.constant 0 : i32
    return %arg0, %c0_i32 : i32, i32
  }
}

</mosaic_0001>

<llo_original>
// kernel: tpu_custom_call.1
$region0: #{tpu_custom_call.1}
  #allocation0 [shape = 'u32[]', space=smem, size = 0x4, offset = 0x4, fixed_abs, tag = 'smem constant byte address 0x4 - core index']
  #allocation1 [shape = 'u32[144,128]{1,0:T(1,128)}', space=vmem, size = 0x12000, scoped, tag = 'internal scratch']
  %s0 = inlined_call_operand.vmem [shape: f32[256,16], index: 0, kind: input, shape index: {}]
  %s1 = inlined_call_operand.vmem [shape: bf16[16,128], index: 1, kind: input, shape index: {}]
  %s2 = inlined_call_operand.vmem [shape: f32[1,128], index: 2, kind: input, shape index: {}]
  %s3 = inlined_call_operand.vmem [shape: bf16[128,128], index: 3, kind: input, shape index: {}]
  %s4 = inlined_call_operand.vmem [shape: f32[1,128], index: 4, kind: input, shape index: {}]
  %s5 = inlined_call_operand.hbm [shape: bf16[256,128], index: 5, kind: output, shape index: {}]
  %s6 = sld [smem:[#allocation0]]
  $region53: #{tpu_custom_call.1} parent=0
    _
  %s8 = ssub.s32 1, %s6
  %s9 = scalar_select 0, %s8, %s6
  $region1: #{tpu_custom_call.1} parent=0
    #allocation2 [shape = 'u8[65536]{0}', space=vmem, size = 0x10000, scoped, tag = 'output window, operand 0']
    #allocation3 [shape = 's32[2]{0}', space=sflag, size = 0x8, scoped, tag = 'scoped memory for tpu_custom_call.1']
    %10 = vsyncpa [#allocation3], 0
    %s11 = scalar_lea.sflag [#allocation3], 1
    %12 = vsyncpa %s11, 0
    loop: start=0, step=1, limit=4
    $region2: #{tpu_custom_call.1} parent=1 // loop_pre_header
      _
    $region3: #{tpu_custom_call.1} parent=1 // loop_header
      %s14 = sphi 0, %s18
      %p15 = scmp.ge.s32.totalorder %s14, 4
      %s24 = sphi 0, %s26
      %s27 = sphi 0, %s24
      %s28 = sphi 0, %s27
      %s44 = sphi 0, %s28
      %s48 = sphi 0, %s48
      %s50 = sphi 0, %s48
      %s51 = sphi 0, %s50
      %s65 = sphi 0, %s51
      %s69 = sphi 0, %s69
      %s71 = sphi 0, %s69
      %s72 = sphi 0, %s71
      %s86 = sphi 0, %s72
      %s90 = sphi 0, %s90
      %s92 = sphi 0, %s90
      %s93 = sphi 0, %s92
      %s107 = sphi 0, %s93
      %s111 = sphi 0, %s111
      %s113 = sphi 0, %s111
      %s114 = sphi 0, %s113
      %s128 = sphi 0, %s114
      %s134 = sphi 0, %s136
      %s137 = sphi 0, %s134
      %s138 = sphi 0, %s137
      %s154 = sphi 0, %s138
    $region4: #{tpu_custom_call.1} parent=1 // loop_header_branch
      %17 = sbr.rel (%p15) target = $region8
    $region5: #{tpu_custom_call.1} parent=1 // loop_body
      %s19 = ssub.s32 %s14, 1
      %s20 = ssub.s32 %s14, 2
      %s21 = sadd.s32 %s14, 1
      %s22 = ssub.s32 %s14, %s21
      %p23 = scmp.eq.s32.totalorder %s22, 0
      %s25 = sadd.s32 %s24, 1
      %s26 = scalar_select %p23, %s24, %s25
      %p29 = pneg %p23
      %p30 = scmp.eq.s32.totalorder %s14, 1
      %p31 = por %p29, %p30
      %p32 = scmp.ne.s32.totalorder %s24, %s27
      %p33 = scmp.eq.s32.totalorder %s14, 0
      %p34 = por %p32, %p33
      %p35 = scmp.ne.s32.totalorder %s24, %s27
      %p36 = scmp.eq.s32.totalorder %s19, 1
      %p37 = por %p35, %p36
      %p38 = scmp.ne.s32.totalorder %s27, %s28
      %p39 = scmp.eq.s32.totalorder %s19, 0
      %p40 = por %p38, %p39
      %p41 = scmp.ne.s32.totalorder %s27, %s28
      %p42 = scmp.eq.s32.totalorder %s20, 1
      %p43 = por %p41, %p42
      %p45 = scmp.ne.s32.totalorder %s28, %s44
      %p46 = scmp.eq.s32.totalorder %s20, 0
      %p47 = por %p45, %p46
      %s49 = sadd.s32 %s48, 1
      %p52 = scmp.eq.s32.totalorder %s14, 1
      %p53 = scmp.ne.s32.totalorder %s48, %s50
      %p54 = scmp.eq.s32.totalorder %s14, 0
      %p55 = por %p53, %p54
      %p56 = scmp.ne.s32.totalorder %s48, %s50
      %p57 = scmp.eq.s32.totalorder %s19, 1
      %p58 = por %p56, %p57
      %p59 = scmp.ne.s32.totalorder %s50, %s51
      %p60 = scmp.eq.s32.totalorder %s19, 0
      %p61 = por %p59, %p60
      %p62 = scmp.ne.s32.totalorder %s50, %s51
      %p63 = scmp.eq.s32.totalorder %s20, 1
      %p64 = por %p62, %p63
      %p66 = scmp.ne.s32.totalorder %s51, %s65
      %p67 = scmp.eq.s32.totalorder %s20, 0
      %p68 = por %p66, %p67
      %s70 = sadd.s32 %s69, 1
      %p73 = scmp.eq.s32.totalorder %s14, 1
      %p74 = scmp.ne.s32.totalorder %s69, %s71
      %p75 = scmp.eq.s32.totalorder %s14, 0
      %p76 = por %p74, %p75
      %p77 = scmp.ne.s32.totalorder %s69, %s71
      %p78 = scmp.eq.s32.totalorder %s19, 1
      %p79 = por %p77, %p78
      %p80 = scmp.ne.s32.totalorder %s71, %s72
      %p81 = scmp.eq.s32.totalorder %s19, 0
      %p82 = por %p80, %p81
      %p83 = scmp.ne.s32.totalorder %s71, %s72
      %p84 = scmp.eq.s32.totalorder %s20, 1
      %p85 = por %p83, %p84
      %p87 = scmp.ne.s32.totalorder %s72, %s86
      %p88 = scmp.eq.s32.totalorder %s20, 0
      %p89 = por %p87, %p88
      %s91 = sadd.s32 %s90, 1
      %p94 = scmp.eq.s32.totalorder %s14, 1
      %p95 = scmp.ne.s32.totalorder %s90, %s92
      %p96 = scmp.eq.s32.totalorder %s14, 0
      %p97 = por %p95, %p96
      %p98 = scmp.ne.s32.totalorder %s90, %s92
      %p99 = scmp.eq.s32.totalorder %s19, 1
      %p100 = por %p98, %p99
      %p101 = scmp.ne.s32.totalorder %s92, %s93
      %p102 = scmp.eq.s32.totalorder %s19, 0
      %p103 = por %p101, %p102
      %p104 = scmp.ne.s32.totalorder %s92, %s93
      %p105 = scmp.eq.s32.totalorder %s20, 1
      %p106 = por %p104, %p105
      %p108 = scmp.ne.s32.totalorder %s93, %s107
      %p109 = scmp.eq.s32.totalorder %s20, 0
      %p110 = por %p108, %p109
      %s112 = sadd.s32 %s111, 1
      %p115 = scmp.eq.s32.totalorder %s14, 1
      %p116 = scmp.ne.s32.totalorder %s111, %s113
      %p117 = scmp.eq.s32.totalorder %s14, 0
      %p118 = por %p116, %p117
      %p119 = scmp.ne.s32.totalorder %s111, %s113
      %p120 = scmp.eq.s32.totalorder %s19, 1
      %p121 = por %p119, %p120
      %p122 = scmp.ne.s32.totalorder %s113, %s114
      %p123 = scmp.eq.s32.totalorder %s19, 0
      %p124 = por %p122, %p123
      %p125 = scmp.ne.s32.totalorder %s113, %s114
      %p126 = scmp.eq.s32.totalorder %s20, 1
      %p127 = por %p125, %p126
      %p129 = scmp.ne.s32.totalorder %s114, %s128
      %p130 = scmp.eq.s32.totalorder %s20, 0
      %p131 = por %p129, %p130
      %s132 = ssub.s32 %s14, %s21
      %p133 = scmp.eq.s32.totalorder %s132, 0
      %s135 = sadd.s32 %s134, 1
      %s136 = scalar_select %p133, %s134, %s135
      %p139 = pneg %p133
      %p140 = scmp.eq.s32.totalorder %s14, 1
      %p141 = por %p139, %p140
      %p142 = scmp.ne.s32.totalorder %s134, %s137
      %p143 = scmp.eq.s32.totalorder %s14, 0
      %p144 = por %p142, %p143
      %p145 = scmp.ne.s32.totalorder %s134, %s137
      %p146 = scmp.eq.s32.totalorder %s19, 1
      %p147 = por %p145, %p146
      %p148 = scmp.ne.s32.totalorder %s137, %s138
      %p149 = scmp.eq.s32.totalorder %s19, 0
      %p150 = por %p148, %p149
      %p151 = scmp.ne.s32.totalorder %s137, %s138
      %p152 = scmp.eq.s32.totalorder %s20, 1
      %p153 = por %p151, %p152
      %p155 = scmp.ne.s32.totalorder %s138, %s154
      %p156 = scmp.eq.s32.totalorder %s20, 0
      %p157 = por %p155, %p156
      %p158 = scmp.le.s32.totalorder 1, %s14
      %p159 = scmp.lt.s32.totalorder %s14, 3
      %p160 = pnand %p158, %p159
      %p161 = pneg %p160
      // Predicated region
      $region9: #{tpu_custom_call.1} parent=5 // pred_check
        _
      $region10: #{tpu_custom_call.1} parent=5 // pred_check_branch
        %163 = sbr.rel (%p160) target = $region12
      $region11: #{tpu_custom_call.1} parent=5 // pred_region
        %s164 = ssub.s32 %s14, 1
        // Predicated region
        $region13: #{tpu_custom_call.1} parent=11 // pred_check
          %p165 = pneg %p61
        $region14: #{tpu_custom_call.1} parent=11 // pred_check_branch
          %167 = sbr.rel (%p165) target = $region16
        $region15: #{tpu_custom_call.1} parent=11 // pred_region
          _
        $region16: #{tpu_custom_call.1} parent=11 // pred_fallthru
          _
        // Predicated region
        $region17: #{tpu_custom_call.1} parent=11 // pred_check
          %p168 = pneg %p82
        $region18: #{tpu_custom_call.1} parent=11 // pred_check_branch
          %170 = sbr.rel (%p168) target = $region20
        $region19: #{tpu_custom_call.1} parent=11 // pred_region
          _
        $region20: #{tpu_custom_call.1} parent=11 // pred_fallthru
          _
        // Predicated region
        $region21: #{tpu_custom_call.1} parent=11 // pred_check
          %p171 = pneg %p103
        $region22: #{tpu_custom_call.1} parent=11 // pred_check_branch
          %173 = sbr.rel (%p171) target = $region24
        $region23: #{tpu_custom_call.1} parent=11 // pred_region
          _
        $region24: #{tpu_custom_call.1} parent=11 // pred_fallthru
          _
        // Predicated region
        $region25: #{tpu_custom_call.1} parent=11 // pred_check
          %p174 = pneg %p124
        $region26: #{tpu_custom_call.1} parent=11 // pred_check_branch
          %176 = sbr.rel (%p174) target = $region28
        $region27: #{tpu_custom_call.1} parent=11 // pred_region
          _
        $region28: #{tpu_custom_call.1} parent=11 // pred_fallthru
          _
      $region12: #{tpu_custom_call.1} parent=5 // pred_fallthru
        _
      %p177 = scmp.lt.s32.totalorder %s14, 2
      // Predicated region
      $region29: #{tpu_custom_call.1} parent=5 // pred_check
        %p178 = pneg %p177
      $region30: #{tpu_custom_call.1} parent=5 // pred_check_branch
        %180 = sbr.rel (%p178) target = $region32
      $region31: #{tpu_custom_call.1} parent=5 // pred_region
        // Predicated region
        $region33: #{tpu_custom_call.1} parent=31 // pred_check
          %p181 = pneg %p34
        $region34: #{tpu_custom_call.1} parent=31 // pred_check_branch
          %183 = sbr.rel (%p181) target = $region36
        $region35: #{tpu_custom_call.1} parent=31 // pred_region
          %s184 = smul.u32 16, %s14
          %p185 = scmp.lt.s32.totalorder %s184, 31
          %s186 = scalar_select %p185, %s184, 31
          %s187 = smul.addr %s186, 8
          %s188 = scalar_lea.vmem %s0, %s187
          %s189 = smul.u32 16, %s14
        $region36: #{tpu_custom_call.1} parent=31 // pred_fallthru
          _
      $region32: #{tpu_custom_call.1} parent=5 // pred_fallthru
        _
      %p190 = scmp.le.s32.totalorder 1, %s14
      %p191 = scmp.lt.s32.totalorder %s14, 3
      %p192 = pnand %p190, %p191
      %p193 = pneg %p192
      // Predicated region
      $region37: #{tpu_custom_call.1} parent=5 // pred_check
        _
      $region38: #{tpu_custom_call.1} parent=5 // pred_check_branch
        %195 = sbr.rel (%p192) target = $region40
      $region39: #{tpu_custom_call.1} parent=5 // pred_region
        %s196 = ssub.s32 %s14, 1
        %s197 = smul.u32 16, %s19
        %p198 = scmp.lt.s32.totalorder %s197, 31
        %s199 = scalar_select %p198, %s197, 31
        %s200 = smul.addr %s199, 8
        %s201 = scalar_lea.vmem %s0, %s200
        %p202 = pneg %p40
        %p203 = pneg %p37
        %p204 = pneg %p61
        %p205 = pneg %p58
        %p206 = pneg %p82
        %p207 = pneg %p79
        %p208 = pneg %p103
        %p209 = pneg %p100
        %p210 = pneg %p124
        %p211 = pneg %p121
        %p212 = pneg %p150
        %p213 = pneg %p147
        %s214 = sand.u32 %s137, 1
        %s215 = scalar_lea.sflag [#allocation3], %s214
        %s216 = sand.u32 %s137, 1
        %s217 = smul.addr %s216, 64
        %s218 = scalar_lea.vmem [#allocation2], %s217
        %s219 = smul.u32 16, %s19
        %p220 = scmp.lt.s32.totalorder %s219, 31
        %s221 = scalar_select %p220, %s219, 31
        %s222 = smul.addr %s221, 8
        %s223 = scalar_lea.vmem %s0, %s222
        %s224 = smul.u32 16, %s19
        %s225 = smul.u32 16, %s19
        %v227 = vld [vmem:[%s223] sm:$0xff]
        %v228 = vld [vmem:[%s223 + $0x8] sm:$0xff]
        %v229 = vld [vmem:[%s223 + $0x10] sm:$0xff]
        %v230 = vld [vmem:[%s223 + $0x18] sm:$0xff]
        %v231 = vld [vmem:[%s223 + $0x20] sm:$0xff]
        %v232 = vld [vmem:[%s223 + $0x28] sm:$0xff]
        %v233 = vld [vmem:[%s223 + $0x30] sm:$0xff]
        %v234 = vld [vmem:[%s223 + $0x38] sm:$0xff]
        %v235 = vld [vmem:[%s223 + $0x40] sm:$0xff]
        %v236 = vld [vmem:[%s223 + $0x48] sm:$0xff]
        %v237 = vld [vmem:[%s223 + $0x50] sm:$0xff]
        %v238 = vld [vmem:[%s223 + $0x58] sm:$0xff]
        %v239 = vld [vmem:[%s223 + $0x60] sm:$0xff]
        %v240 = vld [vmem:[%s223 + $0x68] sm:$0xff]
        %v241 = vld [vmem:[%s223 + $0x70] sm:$0xff]
        %v242 = vld [vmem:[%s223 + $0x78] sm:$0xff]
        %v243 = vpack.c.bf16 %v228, %v227
        %v244 = vpack.c.bf16 %v230, %v229
        %v245 = vpack.c.bf16 %v232, %v231
        %v246 = vpack.c.bf16 %v234, %v233
        %v247 = vpack.c.bf16 %v236, %v235
        %v248 = vpack.c.bf16 %v238, %v237
        %v249 = vpack.c.bf16 %v240, %v239
        %v250 = vpack.c.bf16 %v242, %v241
        %v251 = vld [vmem:[%s1] sm:$0xf]
        %v252 = vld [vmem:[%s1 + $0x4] sm:$0xf]
        %v253 = vld [vmem:[%s2] sm:$0x1]
        %v254 = vld [vmem:[%s3] sm:$0xf]
        %v255 = vld [vmem:[%s3 + $0x4] sm:$0xf]
        %v256 = vld [vmem:[%s3 + $0x8] sm:$0xf]
        %v257 = vld [vmem:[%s3 + $0xc] sm:$0xf]
        %v258 = vld [vmem:[%s3 + $0x10] sm:$0xf]
        %v259 = vld [vmem:[%s3 + $0x14] sm:$0xf]
        %v260 = vld [vmem:[%s3 + $0x18] sm:$0xf]
        %v261 = vld [vmem:[%s3 + $0x1c] sm:$0xf]
        %v262 = vld [vmem:[%s3 + $0x20] sm:$0xf]
        %v263 = vld [vmem:[%s3 + $0x24] sm:$0xf]
        %v264 = vld [vmem:[%s3 + $0x28] sm:$0xf]
        %v265 = vld [vmem:[%s3 + $0x2c] sm:$0xf]
        %v266 = vld [vmem:[%s3 + $0x30] sm:$0xf]
        %v267 = vld [vmem:[%s3 + $0x34] sm:$0xf]
        %v268 = vld [vmem:[%s3 + $0x38] sm:$0xf]
        %v269 = vld [vmem:[%s3 + $0x3c] sm:$0xf]
        %v270 = vld [vmem:[%s4] sm:$0x1]
        %v272 = vlaneseq
        %v273 = vshrl.u32 %v272, 7
        %v274 = vsub.s32 0, %v273
        %v275 = vrot.slane %v253, %v274
        %v279 = vunpack.c.l.b16 %v251
        %v280 = vunpack.c.l.b16 %v252
        %v281 = vpack.c.b16 %v280, %v279
        %vm283 = vcmask 130048
        %v285 = vsel %vm283, %v243, 0
        %v288 = vsel %vm283, %v244, 0
        %v291 = vsel %vm283, %v245, 0
        %v294 = vsel %vm283, %v246, 0
        %v297 = vsel %vm283, %v247, 0
        %v300 = vsel %vm283, %v248, 0
        %v303 = vsel %vm283, %v249, 0
        %v306 = vsel %vm283, %v250, 0
        %308 = vmatprep.subr.bf16.mxu0 0
        %309 = vmatpush1.bf16.msra.mxu0 0
        %310 = vmatprep.subr.bf16.mxu0 0
        %311 = vmatpush1.bf16.msra.mxu0 0
        %312 = vmatprep.subr.bf16.mxu0 0
        %313 = vmatpush1.bf16.msra.mxu0 0
        %314 = vmatprep.subr.bf16.mxu0 0
        %315 = vmatpush1.bf16.msra.mxu0 0
        %316 = vmatprep.subr.bf16.mxu0 0
        %317 = vmatpush1.bf16.msra.mxu0 0
        %318 = vmatprep.subr.bf16.mxu0 0
        %319 = vmatpush1.bf16.msra.mxu0 0
        %320 = vmatprep.subr.bf16.mxu0 0
        %321 = vmatpush1.bf16.msra.mxu0 0
        %322 = vmatprep.subr.bf16.mxu0 0
        %323 = vmatpush1.bf16.msra.mxu0 %v281
        %324 = vmatprep.subr.bf16.mxu0 0
        %325 = vmatpush2.bf16.msra.mxu0 0
        %326 = vmatprep.subr.bf16.mxu0 0
        %327 = vmatpush2.bf16.msra.mxu0 0
        %328 = vmatprep.subr.bf16.mxu0 0
        %329 = vmatpush2.bf16.msra.mxu0 0
        %330 = vmatprep.subr.bf16.mxu0 0
        %331 = vmatpush2.bf16.msra.mxu0 0
        %332 = vmatprep.subr.bf16.mxu0 0
        %333 = vmatpush2.bf16.msra.mxu0 0
        %334 = vmatprep.subr.bf16.mxu0 0
        %335 = vmatpush2.bf16.msra.mxu0 0
        %336 = vmatprep.subr.bf16.mxu0 0
        %337 = vmatpush2.bf16.msra.mxu0 0
        %338 = vmatprep.subr.bf16.mxu0 0
        %339 = vmatpush2.bf16.msra.mxu0 0
        %340 = vmatprep.mubr.bf16.mxu0 0
        %341 = vmatmul.mubr.bf16.gmra.mxu0 %v285
        %v342 = vpop.f32.mrf.mxu0
        %v343 = vadd.f32 %v275, %v342
        %v344 = vpop.f32.mrf.mxu0
        %v345 = vpop.f32.mrf.mxu0
        %v346 = vadd.f32 %v275, %v345
        %v347 = vpop.f32.mrf.mxu0
        %348 = vmatprep.mubr.bf16.mxu0 0
        %349 = vmatmul.mubr.bf16.gmra.mxu0 %v288
        %v350 = vpop.f32.mrf.mxu0
        %v351 = vadd.f32 %v275, %v350
        %v352 = vpop.f32.mrf.mxu0
        %v353 = vpop.f32.mrf.mxu0
        %v354 = vadd.f32 %v275, %v353
        %v355 = vpop.f32.mrf.mxu0
        %356 = vmatprep.mubr.bf16.mxu0 0
        %357 = vmatmul.mubr.bf16.gmra.mxu0 %v291
        %v358 = vpop.f32.mrf.mxu0
        %v359 = vadd.f32 %v275, %v358
        %v360 = vpop.f32.mrf.mxu0
        %v361 = vpop.f32.mrf.mxu0
        %v362 = vadd.f32 %v275, %v361
        %v363 = vpop.f32.mrf.mxu0
        %364 = vmatprep.mubr.bf16.mxu0 0
        %365 = vmatmul.mubr.bf16.gmra.mxu0 %v294
        %v366 = vpop.f32.mrf.mxu0
        %v367 = vadd.f32 %v275, %v366
        %v368 = vpop.f32.mrf.mxu0
        %v369 = vpop.f32.mrf.mxu0
        %v370 = vadd.f32 %v275, %v369
        %v371 = vpop.f32.mrf.mxu0
        %372 = vmatprep.mubr.bf16.mxu0 0
        %373 = vmatmul.mubr.bf16.gmra.mxu0 %v297
        %v374 = vpop.f32.mrf.mxu0
        %v375 = vadd.f32 %v275, %v374
        %v376 = vpop.f32.mrf.mxu0
        %v377 = vpop.f32.mrf.mxu0
        %v378 = vadd.f32 %v275, %v377
        %v379 = vpop.f32.mrf.mxu0
        %380 = vmatprep.mubr.bf16.mxu0 0
        %381 = vmatmul.mubr.bf16.gmra.mxu0 %v300
        %v382 = vpop.f32.mrf.mxu0
        %v383 = vadd.f32 %v275, %v382
        %v384 = vpop.f32.mrf.mxu0
        %v385 = vpop.f32.mrf.mxu0
        %v386 = vadd.f32 %v275, %v385
        %v387 = vpop.f32.mrf.mxu0
        %388 = vmatprep.mubr.bf16.mxu0 0
        %389 = vmatmul.mubr.bf16.gmra.mxu0 %v303
        %v390 = vpop.f32.mrf.mxu0
        %v391 = vadd.f32 %v275, %v390
        %v392 = vpop.f32.mrf.mxu0
        %v393 = vpop.f32.mrf.mxu0
        %v394 = vadd.f32 %v275, %v393
        %v395 = vpop.f32.mrf.mxu0
        %396 = vmatprep.mubr.bf16.mxu0 0
        %397 = vmatmul.mubr.bf16.gmra.mxu0 %v306
        %v398 = vpop.f32.mrf.mxu0
        %v399 = vadd.f32 %v275, %v398
        %v400 = vpop.f32.mrf.mxu0
        %v401 = vpop.f32.mrf.mxu0
        %v402 = vadd.f32 %v275, %v401
        %v403 = vpop.f32.mrf.mxu0
        %404 = vdwg.mxu0
        %v405 = vmax.f32 %v343, 0.0
        %v406 = vmax.f32 %v346, 0.0
        %v407 = vmax.f32 %v351, 0.0
        %v408 = vmax.f32 %v354, 0.0
        %v409 = vmax.f32 %v359, 0.0
        %v410 = vmax.f32 %v362, 0.0
        %v411 = vmax.f32 %v367, 0.0
        %v412 = vmax.f32 %v370, 0.0
        %v413 = vmax.f32 %v375, 0.0
        %v414 = vmax.f32 %v378, 0.0
        %v415 = vmax.f32 %v383, 0.0
        %v416 = vmax.f32 %v386, 0.0
        %v417 = vmax.f32 %v391, 0.0
        %v418 = vmax.f32 %v394, 0.0
        %v419 = vmax.f32 %v399, 0.0
        %v420 = vmax.f32 %v402, 0.0
        %v421 = vpack.c.bf16 %v406, %v405
        %v422 = vpack.c.bf16 %v408, %v407
        %v423 = vpack.c.bf16 %v410, %v409
        %v424 = vpack.c.bf16 %v412, %v411
        %v425 = vpack.c.bf16 %v414, %v413
        %v426 = vpack.c.bf16 %v416, %v415
        %v427 = vpack.c.bf16 %v418, %v417
        %v428 = vpack.c.bf16 %v420, %v419
        %v430 = vlaneseq
        %v431 = vshrl.u32 %v430, 7
        %v432 = vsub.s32 0, %v431
        %v433 = vrot.slane %v270, %v432
        %v451 = vunpack.c.l.b16 %v254
        %v452 = vunpack.c.l.b16 %v255
        %v453 = vunpack.c.l.b16 %v256
        %v454 = vunpack.c.l.b16 %v257
        %v455 = vunpack.c.l.b16 %v258
        %v456 = vunpack.c.l.b16 %v259
        %v457 = vunpack.c.l.b16 %v260
        %v458 = vunpack.c.l.b16 %v261
        %v459 = vunpack.c.l.b16 %v262
        %v460 = vunpack.c.l.b16 %v263
        %v461 = vunpack.c.l.b16 %v264
        %v462 = vunpack.c.l.b16 %v265
        %v463 = vunpack.c.l.b16 %v266
        %v464 = vunpack.c.l.b16 %v267
        %v465 = vunpack.c.l.b16 %v268
        %v466 = vunpack.c.l.b16 %v269
        %v467 = vpack.c.b16 %v452, %v451
        %v468 = vpack.c.b16 %v454, %v453
        %v469 = vpack.c.b16 %v456, %v455
        %v470 = vpack.c.b16 %v458, %v457
        %v471 = vpack.c.b16 %v460, %v459
        %v472 = vpack.c.b16 %v462, %v461
        %v473 = vpack.c.b16 %v464, %v463
        %v474 = vpack.c.b16 %v466, %v465
        %483 = vmatprep.subr.bf16.mxu0 0
        %484 = vmatpush1.bf16.msra.mxu0 %v474
        %485 = vmatprep.subr.bf16.mxu0 0
        %486 = vmatpush1.bf16.msra.mxu0 %v473
        %487 = vmatprep.subr.bf16.mxu0 0
        %488 = vmatpush1.bf16.msra.mxu0 %v472
        %489 = vmatprep.subr.bf16.mxu0 0
        %490 = vmatpush1.bf16.msra.mxu0 %v471
        %491 = vmatprep.subr.bf16.mxu0 0
        %492 = vmatpush1.bf16.msra.mxu0 %v470
        %493 = vmatprep.subr.bf16.mxu0 0
        %494 = vmatpush1.bf16.msra.mxu0 %v469
        %495 = vmatprep.subr.bf16.mxu0 0
        %496 = vmatpush1.bf16.msra.mxu0 %v468
        %497 = vmatprep.subr.bf16.mxu0 0
        %498 = vmatpush1.bf16.msra.mxu0 %v467
        %499 = vmatprep.subr.bf16.mxu0 0
        %500 = vmatpush2.bf16.msra.mxu0 0
        %501 = vmatprep.subr.bf16.mxu0 0
        %502 = vmatpush2.bf16.msra.mxu0 0
        %503 = vmatprep.subr.bf16.mxu0 0
        %504 = vmatpush2.bf16.msra.mxu0 0
        %505 = vmatprep.subr.bf16.mxu0 0
        %506 = vmatpush2.bf16.msra.mxu0 0
        %507 = vmatprep.subr.bf16.mxu0 0
        %508 = vmatpush2.bf16.msra.mxu0 0
        %509 = vmatprep.subr.bf16.mxu0 0
        %510 = vmatpush2.bf16.msra.mxu0 0
        %511 = vmatprep.subr.bf16.mxu0 0
        %512 = vmatpush2.bf16.msra.mxu0 0
        %513 = vmatprep.subr.bf16.mxu0 0
        %514 = vmatpush2.bf16.msra.mxu0 0
        %515 = vmatprep.mubr.bf16.mxu0 0
        %516 = vmatmul.mubr.bf16.gmra.mxu0 %v421
        %v517 = vpop.f32.mrf.mxu0
        %v518 = vadd.f32 %v433, %v517
        %v519 = vpop.f32.mrf.mxu0
        %v520 = vpop.f32.mrf.mxu0
        %v521 = vadd.f32 %v433, %v520
        %v522 = vpop.f32.mrf.mxu0
        %523 = vmatprep.mubr.bf16.mxu0 0
        %524 = vmatmul.mubr.bf16.gmra.mxu0 %v422
        %v525 = vpop.f32.mrf.mxu0
        %v526 = vadd.f32 %v433, %v525
        %v527 = vpop.f32.mrf.mxu0
        %v528 = vpop.f32.mrf.mxu0
        %v529 = vadd.f32 %v433, %v528
        %v530 = vpop.f32.mrf.mxu0
        %531 = vmatprep.mubr.bf16.mxu0 0
        %532 = vmatmul.mubr.bf16.gmra.mxu0 %v423
        %v533 = vpop.f32.mrf.mxu0
        %v534 = vadd.f32 %v433, %v533
        %v535 = vpop.f32.mrf.mxu0
        %v536 = vpop.f32.mrf.mxu0
        %v537 = vadd.f32 %v433, %v536
        %v538 = vpop.f32.mrf.mxu0
        %539 = vmatprep.mubr.bf16.mxu0 0
        %540 = vmatmul.mubr.bf16.gmra.mxu0 %v424
        %v541 = vpop.f32.mrf.mxu0
        %v542 = vadd.f32 %v433, %v541
        %v543 = vpop.f32.mrf.mxu0
        %v544 = vpop.f32.mrf.mxu0
        %v545 = vadd.f32 %v433, %v544
        %v546 = vpop.f32.mrf.mxu0
        %547 = vmatprep.mubr.bf16.mxu0 0
        %548 = vmatmul.mubr.bf16.gmra.mxu0 %v425
        %v549 = vpop.f32.mrf.mxu0
        %v550 = vadd.f32 %v433, %v549
        %v551 = vpop.f32.mrf.mxu0
        %v552 = vpop.f32.mrf.mxu0
        %v553 = vadd.f32 %v433, %v552
        %v554 = vpop.f32.mrf.mxu0
        %555 = vmatprep.mubr.bf16.mxu0 0
        %556 = vmatmul.mubr.bf16.gmra.mxu0 %v426
        %v557 = vpop.f32.mrf.mxu0
        %v558 = vadd.f32 %v433, %v557
        %v559 = vpop.f32.mrf.mxu0
        %v560 = vpop.f32.mrf.mxu0
        %v561 = vadd.f32 %v433, %v560
        %v562 = vpop.f32.mrf.mxu0
        %563 = vmatprep.mubr.bf16.mxu0 0
        %564 = vmatmul.mubr.bf16.gmra.mxu0 %v427
        %v565 = vpop.f32.mrf.mxu0
        %v566 = vadd.f32 %v433, %v565
        %v567 = vpop.f32.mrf.mxu0
        %v568 = vpop.f32.mrf.mxu0
        %v569 = vadd.f32 %v433, %v568
        %v570 = vpop.f32.mrf.mxu0
        %571 = vmatprep.mubr.bf16.mxu0 0
        %572 = vmatmul.mubr.bf16.gmra.mxu0 %v428
        %v573 = vpop.f32.mrf.mxu0
        %v574 = vadd.f32 %v433, %v573
        %v575 = vpop.f32.mrf.mxu0
        %v576 = vpop.f32.mrf.mxu0
        %v577 = vadd.f32 %v433, %v576
        %v578 = vpop.f32.mrf.mxu0
        %579 = vdwg.mxu0
        %580 = vmax.xlane.f32.xlu0 %v518
        %v581 = vpop.xlane.xlu0 %580
        %582 = vmax.xlane.f32.xlu0 %v521
        %v583 = vpop.xlane.xlu0 %582
        %584 = vmax.xlane.f32.xlu0 %v526
        %v585 = vpop.xlane.xlu0 %584
        %586 = vmax.xlane.f32.xlu0 %v529
        %v587 = vpop.xlane.xlu0 %586
        %588 = vmax.xlane.f32.xlu0 %v534
        %v589 = vpop.xlane.xlu0 %588
        %590 = vmax.xlane.f32.xlu0 %v537
        %v591 = vpop.xlane.xlu0 %590
        %592 = vmax.xlane.f32.xlu0 %v542
        %v593 = vpop.xlane.xlu0 %592
        %594 = vmax.xlane.f32.xlu0 %v545
        %v595 = vpop.xlane.xlu0 %594
        %596 = vmax.xlane.f32.xlu0 %v550
        %v597 = vpop.xlane.xlu0 %596
        %598 = vmax.xlane.f32.xlu0 %v553
        %v599 = vpop.xlane.xlu0 %598
        %600 = vmax.xlane.f32.xlu0 %v558
        %v601 = vpop.xlane.xlu0 %600
        %602 = vmax.xlane.f32.xlu0 %v561
        %v603 = vpop.xlane.xlu0 %602
        %604 = vmax.xlane.f32.xlu0 %v566
        %v605 = vpop.xlane.xlu0 %604
        %606 = vmax.xlane.f32.xlu0 %v569
        %v607 = vpop.xlane.xlu0 %606
        %608 = vmax.xlane.f32.xlu0 %v574
        %v609 = vpop.xlane.xlu0 %608
        %610 = vmax.xlane.f32.xlu0 %v577
        %v611 = vpop.xlane.xlu0 %610
        %v612 = vsub.f32 %v518, %v581
        %v613 = vsub.f32 %v521, %v583
        %v614 = vsub.f32 %v526, %v585
        %v615 = vsub.f32 %v529, %v587
        %v616 = vsub.f32 %v534, %v589
        %v617 = vsub.f32 %v537, %v591
        %v618 = vsub.f32 %v542, %v593
        %v619 = vsub.f32 %v545, %v595
        %v620 = vsub.f32 %v550, %v597
        %v621 = vsub.f32 %v553, %v599
        %v622 = vsub.f32 %v558, %v601
        %v623 = vsub.f32 %v561, %v603
        %v624 = vsub.f32 %v566, %v605
        %v625 = vsub.f32 %v569, %v607
        %v626 = vsub.f32 %v574, %v609
        %v627 = vsub.f32 %v577, %v611
        %v628 = vmul.f32 %v612, 1.442695
        %v629 = vpow.pop %v628
        %v630 = vmul.f32 %v613, 1.442695
        %v631 = vpow.pop %v630
        %v632 = vmul.f32 %v614, 1.442695
        %v633 = vpow.pop %v632
        %v634 = vmul.f32 %v615, 1.442695
        %v635 = vpow.pop %v634
        %v636 = vmul.f32 %v616, 1.442695
        %v637 = vpow.pop %v636
        %v638 = vmul.f32 %v617, 1.442695
        %v639 = vpow.pop %v638
        %v640 = vmul.f32 %v618, 1.442695
        %v641 = vpow.pop %v640
        %v642 = vmul.f32 %v619, 1.442695
        %v643 = vpow.pop %v642
        %v644 = vmul.f32 %v620, 1.442695
        %v645 = vpow.pop %v644
        %v646 = vmul.f32 %v621, 1.442695
        %v647 = vpow.pop %v646
        %v648 = vmul.f32 %v622, 1.442695
        %v649 = vpow.pop %v648
        %v650 = vmul.f32 %v623, 1.442695
        %v651 = vpow.pop %v650
        %v652 = vmul.f32 %v624, 1.442695
        %v653 = vpow.pop %v652
        %v654 = vmul.f32 %v625, 1.442695
        %v655 = vpow.pop %v654
        %v656 = vmul.f32 %v626, 1.442695
        %v657 = vpow.pop %v656
        %v658 = vmul.f32 %v627, 1.442695
        %v659 = vpow.pop %v658
        %660 = vadd.xlane.f32.xlu0 %v629
        %v661 = vpop.xlane.xlu0 %660
        %662 = vadd.xlane.f32.xlu0 %v631
        %v663 = vpop.xlane.xlu0 %662
        %664 = vadd.xlane.f32.xlu0 %v633
        %v665 = vpop.xlane.xlu0 %664
        %666 = vadd.xlane.f32.xlu0 %v635
        %v667 = vpop.xlane.xlu0 %666
        %668 = vadd.xlane.f32.xlu0 %v637
        %v669 = vpop.xlane.xlu0 %668
        %670 = vadd.xlane.f32.xlu0 %v639
        %v671 = vpop.xlane.xlu0 %670
        %672 = vadd.xlane.f32.xlu0 %v641
        %v673 = vpop.xlane.xlu0 %672
        %674 = vadd.xlane.f32.xlu0 %v643
        %v675 = vpop.xlane.xlu0 %674
        %676 = vadd.xlane.f32.xlu0 %v645
        %v677 = vpop.xlane.xlu0 %676
        %678 = vadd.xlane.f32.xlu0 %v647
        %v679 = vpop.xlane.xlu0 %678
        %680 = vadd.xlane.f32.xlu0 %v649
        %v681 = vpop.xlane.xlu0 %680
        %682 = vadd.xlane.f32.xlu0 %v651
        %v683 = vpop.xlane.xlu0 %682
        %684 = vadd.xlane.f32.xlu0 %v653
        %v685 = vpop.xlane.xlu0 %684
        %686 = vadd.xlane.f32.xlu0 %v655
        %v687 = vpop.xlane.xlu0 %686
        %688 = vadd.xlane.f32.xlu0 %v657
        %v689 = vpop.xlane.xlu0 %688
        %690 = vadd.xlane.f32.xlu0 %v659
        %v691 = vpop.xlane.xlu0 %690
        %v692 = vrcp.pop %v661
        %v693 = vmul.f32 %v629, %v692
        %v694 = vrcp.pop %v663
        %v695 = vmul.f32 %v631, %v694
        %v696 = vrcp.pop %v665
        %v697 = vmul.f32 %v633, %v696
        %v698 = vrcp.pop %v667
        %v699 = vmul.f32 %v635, %v698
        %v700 = vrcp.pop %v669
        %v701 = vmul.f32 %v637, %v700
        %v702 = vrcp.pop %v671
        %v703 = vmul.f32 %v639, %v702
        %v704 = vrcp.pop %v673
        %v705 = vmul.f32 %v641, %v704
        %v706 = vrcp.pop %v675
        %v707 = vmul.f32 %v643, %v706
        %v708 = vrcp.pop %v677
        %v709 = vmul.f32 %v645, %v708
        %v710 = vrcp.pop %v679
        %v711 = vmul.f32 %v647, %v710
        %v712 = vrcp.pop %v681
        %v713 = vmul.f32 %v649, %v712
        %v714 = vrcp.pop %v683
        %v715 = vmul.f32 %v651, %v714
        %v716 = vrcp.pop %v685
        %v717 = vmul.f32 %v653, %v716
        %v718 = vrcp.pop %v687
        %v719 = vmul.f32 %v655, %v718
        %v720 = vrcp.pop %v689
        %v721 = vmul.f32 %v657, %v720
        %v722 = vrcp.pop %v691
        %v723 = vmul.f32 %v659, %v722
        %v724 = vpack.c.bf16 %v695, %v693
        %v725 = vpack.c.bf16 %v699, %v697
        %v726 = vpack.c.bf16 %v703, %v701
        %v727 = vpack.c.bf16 %v707, %v705
        %v728 = vpack.c.bf16 %v711, %v709
        %v729 = vpack.c.bf16 %v715, %v713
        %v730 = vpack.c.bf16 %v719, %v717
        %v731 = vpack.c.bf16 %v723, %v721
        %v740 = vunpack.c.l.b16 %v724
        %v741 = vunpack.c.h.b16 %v724
        %v742 = vunpack.c.l.b16 %v725
        %v743 = vunpack.c.h.b16 %v725
        %v744 = vunpack.c.l.b16 %v726
        %v745 = vunpack.c.h.b16 %v726
        %v746 = vunpack.c.l.b16 %v727
        %v747 = vunpack.c.h.b16 %v727
        %v748 = vunpack.c.l.b16 %v728
        %v749 = vunpack.c.h.b16 %v728
        %v750 = vunpack.c.l.b16 %v729
        %v751 = vunpack.c.h.b16 %v729
        %v752 = vunpack.c.l.b16 %v730
        %v753 = vunpack.c.h.b16 %v730
        %v754 = vunpack.c.l.b16 %v731
        %v755 = vunpack.c.h.b16 %v731
        %v756 = vpack.c.b16 %v740, %v740
        %v757 = vpack.c.b16 %v741, %v741
        %v758 = vpack.c.b16 %v742, %v742
        %v759 = vpack.c.b16 %v743, %v743
        %v760 = vpack.c.b16 %v744, %v744
        %v761 = vpack.c.b16 %v745, %v745
        %v762 = vpack.c.b16 %v746, %v746
        %v763 = vpack.c.b16 %v747, %v747
        %v764 = vpack.c.b16 %v748, %v748
        %v765 = vpack.c.b16 %v749, %v749
        %v766 = vpack.c.b16 %v750, %v750
        %v767 = vpack.c.b16 %v751, %v751
        %v768 = vpack.c.b16 %v752, %v752
        %v769 = vpack.c.b16 %v753, %v753
        %v770 = vpack.c.b16 %v754, %v754
        %v771 = vpack.c.b16 %v755, %v755
        %788 = vst [vmem:[%s218] sm:$0xf] %v756
        %789 = vst [vmem:[%s218 + $0x4] sm:$0xf] %v757
        %790 = vst [vmem:[%s218 + $0x8] sm:$0xf] %v758
        %791 = vst [vmem:[%s218 + $0xc] sm:$0xf] %v759
        %792 = vst [vmem:[%s218 + $0x10] sm:$0xf] %v760
        %793 = vst [vmem:[%s218 + $0x14] sm:$0xf] %v761
        %794 = vst [vmem:[%s218 + $0x18] sm:$0xf] %v762
        %795 = vst [vmem:[%s218 + $0x1c] sm:$0xf] %v763
        %796 = vst [vmem:[%s218 + $0x20] sm:$0xf] %v764
        %797 = vst [vmem:[%s218 + $0x24] sm:$0xf] %v765
        %798 = vst [vmem:[%s218 + $0x28] sm:$0xf] %v766
        %799 = vst [vmem:[%s218 + $0x2c] sm:$0xf] %v767
        %800 = vst [vmem:[%s218 + $0x30] sm:$0xf] %v768
        %801 = vst [vmem:[%s218 + $0x34] sm:$0xf] %v769
        %802 = vst [vmem:[%s218 + $0x38] sm:$0xf] %v770
        %803 = vst [vmem:[%s218 + $0x3c] sm:$0xf] %v771
        %s804 = sand.u32 %s137, 1
        %s805 = scalar_lea.sflag [#allocation3], %s804
        %s806 = sand.u32 %s137, 1
        %s807 = smul.addr %s806, 64
        %s808 = scalar_lea.vmem [#allocation2], %s807
        // Predicated region
        $region41: #{tpu_custom_call.1} parent=39 // pred_check
          %p809 = pneg %p147
        $region42: #{tpu_custom_call.1} parent=39 // pred_check_branch
          %811 = sbr.rel (%p809) target = $region44
        $region43: #{tpu_custom_call.1} parent=39 // pred_region
          %s812 = smul.u32 16, %s19
          %s814 = ssub.s32 1024, 1024
          %815 = vsyncadd %s805, %s814
          %s816 = smul.addr %s812, 64
          %s817 = scalar_lea.hbm %s5, %s816
          %s818 = sshll.u32 %s808, 4
          %s819 = int_to_ptr.vmem [resolvable:$true] %s818
          %824 = dma.vmem_to_hbm [thread:$0]  %s819, 1024, %s817, %s805, 64, 64, 4
        $region44: #{tpu_custom_call.1} parent=39 // pred_fallthru
          _
      $region40: #{tpu_custom_call.1} parent=5 // pred_fallthru
        _
      %p825 = scmp.le.s32.totalorder 2, %s14
      // Predicated region
      $region45: #{tpu_custom_call.1} parent=5 // pred_check
        %p826 = pneg %p825
      $region46: #{tpu_custom_call.1} parent=5 // pred_check_branch
        %828 = sbr.rel (%p826) target = $region48
      $region47: #{tpu_custom_call.1} parent=5 // pred_region
        %s829 = ssub.s32 %s14, 2
        // Predicated region
        $region49: #{tpu_custom_call.1} parent=47 // pred_check
          %p830 = pneg %p153
        $region50: #{tpu_custom_call.1} parent=47 // pred_check_branch
          %832 = sbr.rel (%p830) target = $region52
        $region51: #{tpu_custom_call.1} parent=47 // pred_region
          %s833 = sand.u32 %s138, 1
          %s834 = scalar_lea.sflag [#allocation3], %s833
          %s835 = sand.u32 %s138, 1
          %s836 = smul.addr %s835, 64
          %s837 = scalar_lea.vmem [#allocation2], %s836
          %838 = dma.done %s834, 1024
        $region52: #{tpu_custom_call.1} parent=47 // pred_fallthru
          _
      $region48: #{tpu_custom_call.1} parent=5 // pred_fallthru
        _
    $region6: #{tpu_custom_call.1} parent=1 // loop_footer
      %s18 = sadd.s32 1, %s14
    $region7: #{tpu_custom_call.1} parent=1 // loop_footer_branch
      %13 = sbr.rel target = $region3
    $region8: #{tpu_custom_call.1} parent=1 // loop_exit
      _
    %839 = vsyncpa [#allocation3], 1
    %s840 = scalar_lea.sflag [#allocation3], 1
    %841 = vsyncpa %s840, 1

</llo_original>
